<compile_context>
chip_gen: v5e
topology: v5e:2x2
jax: 0.10.0
libtpu: 0.0.40
codegen_flags: <defaults>
</compile_context>

<pallas_src>
import jax
import jax.numpy as jnp
from jax import lax
from jax.experimental import pallas as pl
from jax.experimental.pallas import tpu as pltpu


def _round_up(x, m):
    return ((x + m - 1) // m) * m


def _cdiv(a, b):
    return (a + b - 1) // b


def _multitask_kernel(u_ref, v_ref, ub_ref, ib_ref, w1_ref, b1_ref, w2_ref,
                      b2_ref, out_ref):
    u = u_ref[...]                       # (TB, D) f32
    v = v_ref[...]                       # (TB, D) f32
    uv = u * v                           # elementwise product (VPU)

    # predictions = sum(u*v, dim=1) + user_bias + item_bias
    pred = (jnp.sum(uv, axis=1, keepdims=True)
            + ub_ref[...] + ib_ref[...])                      # (TB, 1)

    # score MLP, layer 1: equivalent to concat([u, v, u*v]) @ W1 + b1,
    # implemented as three accumulating matmuls over static (D, H) panels of
    # W1 (panel order matches the torch concat order; avoids the
    # lane-unaligned concat relayout).
    D = u.shape[1]
    h = (jnp.dot(u, w1_ref[0:D, :], preferred_element_type=jnp.float32)
         + jnp.dot(v, w1_ref[D:2 * D, :], preferred_element_type=jnp.float32)
         + jnp.dot(uv, w1_ref[2 * D:3 * D, :],
                   preferred_element_type=jnp.float32)
         + b1_ref[...])                                       # (TB, H)
    h = jnp.maximum(h, 0.0)                                   # ReLU

    # score MLP, layer 2 (H -> 1): VPU multiply + lane reduction against the
    # (1, H) weight row (not an N=1 MXU matmul).  b2 is a scalar in SMEM.
    score = jnp.sum(h * w2_ref[...], axis=1, keepdims=True) + b2_ref[0, 0]

    # Single packed full-tile store: lane 0 = predictions, lane 1 = score.
    col = lax.broadcasted_iota(jnp.int32, (u.shape[0], 2), 1)
    out_ref[...] = jnp.where(col == 0, pred, score)


def multitask_forward(user_emb, item_emb, user_bias, item_bias,
                      w1, b1, w2_row, b2, block_b=4096):
    """user_emb/item_emb: (B, D); user_bias/item_bias: (B, 1);
    w1: (3D, H); b1: (1, H); w2_row: (1, H); b2: (1, 1).
    Returns (predictions, score), each shape (B,)."""
    B, D = user_emb.shape
    H = w1.shape[1]

    # Batch tile: multiple of 8 sublanes, capped by block_b, and (for B >= 16)
    # capped at ceil(B/2) so the "parallel" grid axis has >= 2 steps for the
    # v7x megacore.  No input padding: the ragged last tile is masked by
    # Pallas (garbage input rows are harmless -- all math is row-wise -- and
    # out-of-bounds output rows are dropped).
    TB = max(8, min(block_b, _round_up(_cdiv(B, 2), 8)))
    grid = (_cdiv(B, TB),)

    out = pl.pallas_call(
        _multitask_kernel,
        out_shape=jax.ShapeDtypeStruct((B, 2), jnp.float32),
        grid=grid,
        in_specs=[
            pl.BlockSpec((TB, D), lambda i: (i, 0)),      # user embeddings
            pl.BlockSpec((TB, D), lambda i: (i, 0)),      # item embeddings
            pl.BlockSpec((TB, 1), lambda i: (i, 0)),      # user bias
            pl.BlockSpec((TB, 1), lambda i: (i, 0)),      # item bias
            pl.BlockSpec((3 * D, H), lambda i: (0, 0)),   # W1 (VMEM-resident)
            pl.BlockSpec((1, H), lambda i: (0, 0)),       # b1
            pl.BlockSpec((1, H), lambda i: (0, 0)),       # w2 row
            pl.BlockSpec(memory_space=pltpu.MemorySpace.SMEM),  # b2 scalar
        ],
        out_specs=pl.BlockSpec((TB, 2), lambda i: (i, 0)),
        compiler_params=pltpu.CompilerParams(
            dimension_semantics=("parallel",)),
    )(user_emb, item_emb, user_bias, item_bias, w1, b1, w2_row, b2)

    return out[:, 0], out[:, 1]


class MultiTaskNetPallas:
    """JAX/Pallas port of MultiTaskNet with embedding_sharing=True,
    embedding_dim=32, layer_sizes=[96, 64]."""

    def __init__(self, num_users, num_items, embedding_dim=32,
                 layer_sizes=(96, 64), seed=0, block_b=4096):
        assert layer_sizes[0] == 3 * embedding_dim
        self.block_b = block_b
        key = jax.random.PRNGKey(seed)
        k_ue, k_ie, k_w1, k_b1, k_w2, k_b2 = jax.random.split(key, 6)

        # ScaledEmbedding: normal(0, 1/embedding_dim)
        self.user_table = (jax.random.normal(k_ue, (num_users, embedding_dim),
                                             jnp.float32) / embedding_dim)
        self.item_table = (jax.random.normal(k_ie, (num_items, embedding_dim),
                                             jnp.float32) / embedding_dim)
        # ZeroEmbedding biases
        self.user_bias_table = jnp.zeros((num_users, 1), jnp.float32)
        self.item_bias_table = jnp.zeros((num_items, 1), jnp.float32)

        # nn.Linear(96, 64): U(-1/sqrt(in), 1/sqrt(in)); stored as (in, out)
        fan_in1 = layer_sizes[0]
        bound1 = 1.0 / jnp.sqrt(fan_in1)
        self.w1 = jax.random.uniform(k_w1, (layer_sizes[0], layer_sizes[1]),
                                     jnp.float32, -bound1, bound1)
        self.b1 = jax.random.uniform(k_b1, (1, layer_sizes[1]),
                                     jnp.float32, -bound1, bound1)
        # nn.Linear(64, 1): weight stored as a (1, H) row for the VPU reduce.
        fan_in2 = layer_sizes[1]
        bound2 = 1.0 / jnp.sqrt(fan_in2)
        self.w2_row = jax.random.uniform(k_w2, (1, layer_sizes[1]),
                                         jnp.float32, -bound2, bound2)
        self.b2 = jax.random.uniform(k_b2, (1, 1),
                                     jnp.float32, -bound2, bound2)

    def __call__(self, user_ids, item_ids):
        # Embedding gather = glue (data-dependent row lookup), see TODO(synk).
        u = jnp.take(self.user_table, user_ids, axis=0)         # (B, D)
        v = jnp.take(self.item_table, item_ids, axis=0)         # (B, D)
        ub = jnp.take(self.user_bias_table, user_ids, axis=0)   # (B, 1)
        ib = jnp.take(self.item_bias_table, item_ids, axis=0)   # (B, 1)
        return multitask_forward(u, v, ub, ib, self.w1, self.b1,
                                 self.w2_row, self.b2, block_b=self.block_b)


def _reference(u, v, ub, ib, w1, b1, w2_row, b2):
    pred = jnp.sum(u * v, axis=1) + ub[:, 0] + ib[:, 0]
    cat = jnp.concatenate([u, v, u * v], axis=1)
    h = jnp.maximum(cat @ w1 + b1, 0.0)
    score = jnp.sum(h * w2_row, axis=1) + b2[0, 0]
    return pred, score


if __name__ == "__main__":
    num_users, num_items = 32, 48
    embedding_dim = 32

    net = MultiTaskNetPallas(num_users, num_items, embedding_dim=embedding_dim,
                             layer_sizes=(96, 64), seed=0)

    key = jax.random.PRNGKey(0)
    ku, ki, ku2, ki2 = jax.random.split(key, 4)

    # --- Test 1: small batch (single tile) through the class wrapper. ---
    batch = 8
    user_ids = jax.random.randint(ku, (batch,), 0, num_users, dtype=jnp.int32)
    item_ids = jax.random.randint(ki, (batch,), 0, num_items, dtype=jnp.int32)

    predictions, score = net(user_ids, item_ids)
    jax.block_until_ready((predictions, score))

    u = jnp.take(net.user_table, user_ids, axis=0)
    v = jnp.take(net.item_table, item_ids, axis=0)
    ub = jnp.take(net.user_bias_table, user_ids, axis=0)
    ib = jnp.take(net.item_bias_table, item_ids, axis=0)
    pred_ref, score_ref = _reference(u, v, ub, ib, net.w1, net.b1,
                                     net.w2_row, net.b2)
    assert predictions.shape == (batch,) and score.shape == (batch,)
    assert jnp.allclose(predictions, pred_ref, atol=1e-5)
    assert jnp.allclose(score, score_ref, atol=1e-5)

    # --- Test 2: multi-tile grid with a ragged last tile (B not divisible by
    # TB, nor by 8) using a small block_b to force several grid steps. ---
    batch2 = 203
    user_ids2 = jax.random.randint(ku2, (batch2,), 0, num_users,
                                   dtype=jnp.int32)
    item_ids2 = jax.random.randint(ki2, (batch2,), 0, num_items,
                                   dtype=jnp.int32)
    u2 = jnp.take(net.user_table, user_ids2, axis=0)
    v2 = jnp.take(net.item_table, item_ids2, axis=0)
    ub2 = jnp.take(net.user_bias_table, user_ids2, axis=0)
    ib2 = jnp.take(net.item_bias_table, item_ids2, axis=0)

    pred2, score2 = multitask_forward(u2, v2, ub2, ib2, net.w1, net.b1,
                                      net.w2_row, net.b2, block_b=64)
    jax.block_until_ready((pred2, score2))

    pred2_ref, score2_ref = _reference(u2, v2, ub2, ib2, net.w1, net.b1,
                                       net.w2_row, net.b2)
    assert pred2.shape == (batch2,) and score2.shape == (batch2,)
    assert jnp.allclose(pred2, pred2_ref, atol=1e-5)
    assert jnp.allclose(score2, score2_ref, atol=1e-5)

    print("KERNEL_OK")
</pallas_src>

<mosaic_0001>
module attributes {stable_mosaic.version = 11 : i64} {
  func.func @_multitask_kernel(%arg0: i32, %arg1: memref<8x32xf32, #tpu.memory_space<vmem>>, %arg2: memref<8x32xf32, #tpu.memory_space<vmem>>, %arg3: memref<8x1xf32, #tpu.memory_space<vmem>>, %arg4: memref<8x1xf32, #tpu.memory_space<vmem>>, %arg5: memref<96x64xf32, #tpu.memory_space<vmem>>, %arg6: memref<1x64xf32, #tpu.memory_space<vmem>>, %arg7: memref<1x64xf32, #tpu.memory_space<vmem>>, %arg8: memref<1x1xf32, #tpu.memory_space<smem>>, %arg9: memref<8x2xf32, #tpu.memory_space<vmem>>) attributes {dimension_semantics = [#tpu.dimension_semantics<parallel>], iteration_bounds = array<i64: 1>, scalar_prefetch = 0 : i64, scratch_operands = 0 : i64, tpu.core_type = #tpu.core_type<tc>, window_params = [{transform_indices = @transform_0, window_bounds = array<i64: 8, 32>}, {transform_indices = @transform_1, window_bounds = array<i64: 8, 32>}, {transform_indices = @transform_2, window_bounds = array<i64: 8, 1>}, {transform_indices = @transform_3, window_bounds = array<i64: 8, 1>}, {pipeline_mode = #tpu.pipeline_mode<synchronous>, transform_indices = @transform_4, window_bounds = array<i64: 96, 64>}, {pipeline_mode = #tpu.pipeline_mode<synchronous>, transform_indices = @transform_5, window_bounds = array<i64: 1, 64>}, {pipeline_mode = #tpu.pipeline_mode<synchronous>, transform_indices = @transform_6, window_bounds = array<i64: 1, 64>}, {transform_indices = @transform_7, window_bounds = array<i64: 1, 1>}, {transform_indices = @transform_8, window_bounds = array<i64: 8, 2>}]} {
    %c0 = arith.constant 0 : index
    %c0_0 = arith.constant 0 : index
    %0 = vector.load %arg1[%c0, %c0_0] : memref<8x32xf32, #tpu.memory_space<vmem>>, vector<8x32xf32>
    %c0_1 = arith.constant 0 : index
    %c0_2 = arith.constant 0 : index
    %1 = vector.load %arg2[%c0_1, %c0_2] : memref<8x32xf32, #tpu.memory_space<vmem>>, vector<8x32xf32>
    %2 = arith.mulf %0, %1 : vector<8x32xf32>
    %cst = arith.constant dense<0.000000e+00> : vector<8xf32>
    %3 = vector.multi_reduction <add>, %2, %cst [1] : vector<8x32xf32> to vector<8xf32>
    %4 = vector.shape_cast %3 : vector<8xf32> to vector<8x1xf32>
    %c0_3 = arith.constant 0 : index
    %c0_4 = arith.constant 0 : index
    %5 = vector.load %arg3[%c0_3, %c0_4] : memref<8x1xf32, #tpu.memory_space<vmem>>, vector<8x1xf32>
    %6 = arith.addf %4, %5 : vector<8x1xf32>
    %c0_5 = arith.constant 0 : index
    %c0_6 = arith.constant 0 : index
    %7 = vector.load %arg4[%c0_5, %c0_6] : memref<8x1xf32, #tpu.memory_space<vmem>>, vector<8x1xf32>
    %8 = arith.addf %6, %7 : vector<8x1xf32>
    %c0_7 = arith.constant 0 : index
    %c0_8 = arith.constant 0 : index
    %9 = vector.load %arg5[%c0_7, %c0_8] : memref<96x64xf32, #tpu.memory_space<vmem>>, vector<32x64xf32>
    %cst_9 = arith.constant dense<0.000000e+00> : vector<8x64xf32>
    %10 = tpu.matmul %0, %9, %cst_9 {dimension_numbers = #tpu.dot_dimension_numbers<[1], [0], [0], [1], [0, 0, 1, 1], [], []>} : vector<8x32xf32>, vector<32x64xf32>, vector<8x64xf32> -> vector<8x64xf32>
    %c32 = arith.constant 32 : index
    %c0_10 = arith.constant 0 : index
    %11 = vector.load %arg5[%c32, %c0_10] : memref<96x64xf32, #tpu.memory_space<vmem>>, vector<32x64xf32>
    %cst_11 = arith.constant dense<0.000000e+00> : vector<8x64xf32>
    %12 = tpu.matmul %1, %11, %cst_11 {dimension_numbers = #tpu.dot_dimension_numbers<[1], [0], [0], [1], [0, 0, 1, 1], [], []>} : vector<8x32xf32>, vector<32x64xf32>, vector<8x64xf32> -> vector<8x64xf32>
    %13 = arith.addf %10, %12 : vector<8x64xf32>
    %c64 = arith.constant 64 : index
    %c0_12 = arith.constant 0 : index
    %14 = vector.load %arg5[%c64, %c0_12] : memref<96x64xf32, #tpu.memory_space<vmem>>, vector<32x64xf32>
    %cst_13 = arith.constant dense<0.000000e+00> : vector<8x64xf32>
    %15 = tpu.matmul %2, %14, %cst_13 {dimension_numbers = #tpu.dot_dimension_numbers<[1], [0], [0], [1], [0, 0, 1, 1], [], []>} : vector<8x32xf32>, vector<32x64xf32>, vector<8x64xf32> -> vector<8x64xf32>
    %16 = arith.addf %13, %15 : vector<8x64xf32>
    %c0_14 = arith.constant 0 : index
    %c0_15 = arith.constant 0 : index
    %17 = vector.load %arg6[%c0_14, %c0_15] : memref<1x64xf32, #tpu.memory_space<vmem>>, vector<1x64xf32>
    %18 = vector.broadcast %17 : vector<1x64xf32> to vector<8x64xf32>
    %19 = arith.addf %16, %18 : vector<8x64xf32>
    %cst_16 = arith.constant 0.000000e+00 : f32
    %20 = vector.broadcast %cst_16 : f32 to vector<8x64xf32>
    %21 = arith.maximumf %19, %20 : vector<8x64xf32>
    %c0_17 = arith.constant 0 : index
    %c0_18 = arith.constant 0 : index
    %22 = vector.load %arg7[%c0_17, %c0_18] : memref<1x64xf32, #tpu.memory_space<vmem>>, vector<1x64xf32>
    %23 = vector.broadcast %22 : vector<1x64xf32> to vector<8x64xf32>
    %24 = arith.mulf %21, %23 : vector<8x64xf32>
    %cst_19 = arith.constant dense<0.000000e+00> : vector<8xf32>
    %25 = vector.multi_reduction <add>, %24, %cst_19 [1] : vector<8x64xf32> to vector<8xf32>
    %26 = vector.shape_cast %25 : vector<8xf32> to vector<8x1xf32>
    %c0_20 = arith.constant 0 : index
    %c0_21 = arith.constant 0 : index
    %27 = memref.load %arg8[%c0_20, %c0_21] : memref<1x1xf32, #tpu.memory_space<smem>>
    %28 = vector.broadcast %27 : f32 to vector<8x1xf32>
    %29 = arith.addf %26, %28 : vector<8x1xf32>
    %30 = tpu.iota {dimensions = array<i32: 1>} : vector<8x2xi32>
    %c0_i32 = arith.constant 0 : i32
    %31 = vector.broadcast %c0_i32 : i32 to vector<8x2xi32>
    %32 = arith.cmpi eq, %30, %31 : vector<8x2xi32>
    %33 = vector.shape_cast %8 : vector<8x1xf32> to vector<8x1xf32>
    %34 = vector.broadcast %33 : vector<8x1xf32> to vector<8x2xf32>
    %35 = vector.shape_cast %29 : vector<8x1xf32> to vector<8x1xf32>
    %36 = vector.broadcast %35 : vector<8x1xf32> to vector<8x2xf32>
    %37 = arith.select %32, %34, %36 : vector<8x2xi1>, vector<8x2xf32>
    %c0_22 = arith.constant 0 : index
    %c0_23 = arith.constant 0 : index
    %38 = vector.load %arg9[%c0_22, %c0_23] : memref<8x2xf32, #tpu.memory_space<vmem>>, vector<8x2xf32>
    tpu.vector_store %arg9[%c0_22, %c0_23], %37 {strides = array<i32>} : memref<8x2xf32, #tpu.memory_space<vmem>>, vector<8x2xf32>,
    return
  }
  func.func @transform_0(%arg0: i32) -> (i32, i32) {
    %c0_i32 = arith.constant 0 : i32
    %c0_i32_0 = arith.constant 0 : i32
    return %arg0, %c0_i32 : i32, i32
  }
  func.func @transform_1(%arg0: i32) -> (i32, i32) {
    %c0_i32 = arith.constant 0 : i32
    %c0_i32_0 = arith.constant 0 : i32
    return %arg0, %c0_i32 : i32, i32
  }
  func.func @transform_2(%arg0: i32) -> (i32, i32) {
    %c0_i32 = arith.constant 0 : i32
    %c0_i32_0 = arith.constant 0 : i32
    return %arg0, %c0_i32 : i32, i32
  }
  func.func @transform_3(%arg0: i32) -> (i32, i32) {
    %c0_i32 = arith.constant 0 : i32
    %c0_i32_0 = arith.constant 0 : i32
    return %arg0, %c0_i32 : i32, i32
  }
  func.func @transform_4(%arg0: i32) -> (i32, i32) {
    %c0_i32 = arith.constant 0 : i32
    %c0_i32_0 = arith.constant 0 : i32
    %c0_i32_1 = arith.constant 0 : i32
    return %c0_i32, %c0_i32_0 : i32, i32
  }
  func.func @transform_5(%arg0: i32) -> (i32, i32) {
    %c0_i32 = arith.constant 0 : i32
    %c0_i32_0 = arith.constant 0 : i32
    %c0_i32_1 = arith.constant 0 : i32
    return %c0_i32, %c0_i32_0 : i32, i32
  }
  func.func @transform_6(%arg0: i32) -> (i32, i32) {
    %c0_i32 = arith.constant 0 : i32
    %c0_i32_0 = arith.constant 0 : i32
    %c0_i32_1 = arith.constant 0 : i32
    return %c0_i32, %c0_i32_0 : i32, i32
  }
  func.func @transform_7(%arg0: i32) -> (i32, i32) {
    %c0_i32 = arith.constant 0 : i32
    %c0_i32_0 = arith.constant 0 : i32
    %c0_i32_1 = arith.constant 0 : i32
    return %c0_i32, %c0_i32_0 : i32, i32
  }
  func.func @transform_8(%arg0: i32) -> (i32, i32) {
    %c0_i32 = arith.constant 0 : i32
    %c0_i32_0 = arith.constant 0 : i32
    return %arg0, %c0_i32 : i32, i32
  }
}

</mosaic_0001>

<llo_original>
// kernel: tpu_custom_call.1
$region0: #{tpu_custom_call.1}
  #allocation0 [shape = 'u32[]', space=smem, size = 0x4, offset = 0x4, fixed_abs, tag = 'smem constant byte address 0x4 - core index']
  #allocation1 [shape = 'u32[72,128]{1,0:T(1,128)}', space=vmem, size = 0x9000, scoped, tag = 'internal scratch']
  #allocation2 [shape = 'f32[1,1]{1,0:T(1,128)S(6)}', space=smem, size = 0x200, scoped, tag = 'scoped memory for tpu_custom_call.1']
  %s0 = inlined_call_operand.vmem [shape: f32[8,32], index: 0, kind: input, shape index: {}]
  %s1 = inlined_call_operand.vmem [shape: f32[8,32], index: 1, kind: input, shape index: {}]
  %s2 = inlined_call_operand.vmem [shape: f32[8,1], index: 2, kind: input, shape index: {}]
  %s3 = inlined_call_operand.vmem [shape: f32[8,1], index: 3, kind: input, shape index: {}]
  %s4 = inlined_call_operand.vmem [shape: f32[96,64], index: 4, kind: input, shape index: {}]
  %s5 = inlined_call_operand.vmem [shape: f32[1,64], index: 5, kind: input, shape index: {}]
  %s6 = inlined_call_operand.vmem [shape: f32[1,64], index: 6, kind: input, shape index: {}]
  %s7 = inlined_call_operand.<no memory space> [shape: f32[1,1], index: 7, kind: input, shape index: {}]
  %s8 = inlined_call_operand.vmem [shape: f32[8,2], index: 8, kind: output, shape index: {}]
  %s9 = sld [smem:[#allocation0]]
  $region42: #{tpu_custom_call.1} parent=0
    _
  %s11 = ssub.s32 1, %s9
  %s12 = scalar_select 0, %s11, %s9
  %13 = sst [smem:[#allocation2]] %s7
  // Predicated region
  $region2: #{tpu_custom_call.1} parent=0 // pred_check
    _
  $region3: #{tpu_custom_call.1} parent=0 // pred_check_branch
    %15 = sbr.rel (0) target = $region5
  $region4: #{tpu_custom_call.1} parent=0 // pred_region
    _
  $region5: #{tpu_custom_call.1} parent=0 // pred_fallthru
    _
  // Predicated region
  $region6: #{tpu_custom_call.1} parent=0 // pred_check
    _
  $region7: #{tpu_custom_call.1} parent=0 // pred_check_branch
    %17 = sbr.rel (0) target = $region9
  $region8: #{tpu_custom_call.1} parent=0 // pred_region
    _
  $region9: #{tpu_custom_call.1} parent=0 // pred_fallthru
    _
  // Predicated region
  $region10: #{tpu_custom_call.1} parent=0 // pred_check
    _
  $region11: #{tpu_custom_call.1} parent=0 // pred_check_branch
    %19 = sbr.rel (0) target = $region13
  $region12: #{tpu_custom_call.1} parent=0 // pred_region
    _
  $region13: #{tpu_custom_call.1} parent=0 // pred_fallthru
    _
  // Predicated region
  $region14: #{tpu_custom_call.1} parent=0 // pred_check
    _
  $region15: #{tpu_custom_call.1} parent=0 // pred_check_branch
    %21 = sbr.rel (0) target = $region17
  $region16: #{tpu_custom_call.1} parent=0 // pred_region
    _
  $region17: #{tpu_custom_call.1} parent=0 // pred_fallthru
    _
  // Predicated region
  $region18: #{tpu_custom_call.1} parent=0 // pred_check
    _
  $region19: #{tpu_custom_call.1} parent=0 // pred_check_branch
    %23 = sbr.rel (0) target = $region21
  $region20: #{tpu_custom_call.1} parent=0 // pred_region
    _
  $region21: #{tpu_custom_call.1} parent=0 // pred_fallthru
    _
  // Predicated region
  $region22: #{tpu_custom_call.1} parent=0 // pred_check
    _
  $region23: #{tpu_custom_call.1} parent=0 // pred_check_branch
    %25 = sbr.rel (0) target = $region25
  $region24: #{tpu_custom_call.1} parent=0 // pred_region
    _
  $region25: #{tpu_custom_call.1} parent=0 // pred_fallthru
    _
  // Predicated region
  $region26: #{tpu_custom_call.1} parent=0 // pred_check
    _
  $region27: #{tpu_custom_call.1} parent=0 // pred_check_branch
    %27 = sbr.rel (0) target = $region29
  $region28: #{tpu_custom_call.1} parent=0 // pred_region
    _
  $region29: #{tpu_custom_call.1} parent=0 // pred_fallthru
    _
  // Predicated region
  $region30: #{tpu_custom_call.1} parent=0 // pred_check
    _
  $region31: #{tpu_custom_call.1} parent=0 // pred_check_branch
    %29 = sbr.rel (0) target = $region33
  $region32: #{tpu_custom_call.1} parent=0 // pred_region
    _
  $region33: #{tpu_custom_call.1} parent=0 // pred_fallthru
    _
  %v30 = vld [vmem:[%s0] sm:$0xff]
  %v31 = vld [vmem:[%s1] sm:$0xff]
  %v32 = vmul.f32 %v30, %v31
  %vm33 = vcmask 261120
  %v34 = vsel %vm33, %v32, 0.0
  %35 = vadd.xlane.f32.xlu0 %v34
  %v36 = vpop.xlane.xlu0 %35
  %v37 = vld [vmem:[%s2] sm:$0xff]
  %v38 = vadd.f32 %v36, %v37
  %v39 = vld [vmem:[%s3] sm:$0xff]
  %v40 = vadd.f32 %v38, %v39
  %v41 = vld [vmem:[%s4] sm:$0xff]
  %v42 = vld [vmem:[%s4 + $0x8] sm:$0xff]
  %v43 = vld [vmem:[%s4 + $0x10] sm:$0xff]
  %v44 = vld [vmem:[%s4 + $0x18] sm:$0xff]
  %v45 = vld [vmem:[%s4 + $0x20] sm:$0xff]
  %v46 = vld [vmem:[%s4 + $0x28] sm:$0xff]
  %v47 = vld [vmem:[%s4 + $0x30] sm:$0xff]
  %v48 = vld [vmem:[%s4 + $0x38] sm:$0xff]
  %v50 = vsel %vm33, %v31, 0
  %52 = vmatpush.msra.mxu0 0.0
  %53 = vmatpush.msra.mxu0 0.0
  %54 = vmatpush.msra.mxu0 0.0
  %55 = vmatpush.msra.mxu0 0.0
  %56 = vmatpush.msra.mxu0 0.0
  %57 = vmatpush.msra.mxu0 0.0
  %58 = vmatpush.msra.mxu0 0.0
  %59 = vmatpush.msra.mxu0 0.0
  %60 = vmatpush.msra.mxu0 0.0
  %61 = vmatpush.msra.mxu0 0.0
  %62 = vmatpush.msra.mxu0 0.0
  %63 = vmatpush.msra.mxu0 0.0
  %64 = vmatpush.msra.mxu0 %v48
  %65 = vmatpush.msra.mxu0 %v47
  %66 = vmatpush.msra.mxu0 %v46
  %67 = vmatpush.msra.mxu0 %v45
  %68 = vmatmul.f32.gmra.mxu0 %v50
  %v69 = vpop.f32.mrf.mxu0
  %v70 = vadd.f32 0.0, %v69
  %71 = vdwg.mxu0
  %v73 = vsel %vm33, %v30, 0
  %75 = vmatpush.msra.mxu0 0.0
  %76 = vmatpush.msra.mxu0 0.0
  %77 = vmatpush.msra.mxu0 0.0
  %78 = vmatpush.msra.mxu0 0.0
  %79 = vmatpush.msra.mxu0 0.0
  %80 = vmatpush.msra.mxu0 0.0
  %81 = vmatpush.msra.mxu0 0.0
  %82 = vmatpush.msra.mxu0 0.0
  %83 = vmatpush.msra.mxu0 0.0
  %84 = vmatpush.msra.mxu0 0.0
  %85 = vmatpush.msra.mxu0 0.0
  %86 = vmatpush.msra.mxu0 0.0
  %87 = vmatpush.msra.mxu0 %v44
  %88 = vmatpush.msra.mxu0 %v43
  %89 = vmatpush.msra.mxu0 %v42
  %90 = vmatpush.msra.mxu0 %v41
  %91 = vmatmul.f32.gmra.mxu0 %v73
  %v92 = vpop.f32.mrf.mxu0
  %v93 = vadd.f32 %v70, %v92
  %94 = vdwg.mxu0
  %v95 = vld [vmem:[%s4 + $0x40] sm:$0xff]
  %v96 = vld [vmem:[%s4 + $0x48] sm:$0xff]
  %v97 = vld [vmem:[%s4 + $0x50] sm:$0xff]
  %v98 = vld [vmem:[%s4 + $0x58] sm:$0xff]
  %v100 = vsel %vm33, %v32, 0
  %102 = vmatpush.msra.mxu0 0.0
  %103 = vmatpush.msra.mxu0 0.0
  %104 = vmatpush.msra.mxu0 0.0
  %105 = vmatpush.msra.mxu0 0.0
  %106 = vmatpush.msra.mxu0 0.0
  %107 = vmatpush.msra.mxu0 0.0
  %108 = vmatpush.msra.mxu0 0.0
  %109 = vmatpush.msra.mxu0 0.0
  %110 = vmatpush.msra.mxu0 0.0
  %111 = vmatpush.msra.mxu0 0.0
  %112 = vmatpush.msra.mxu0 0.0
  %113 = vmatpush.msra.mxu0 0.0
  %114 = vmatpush.msra.mxu0 %v98
  %115 = vmatpush.msra.mxu0 %v97
  %116 = vmatpush.msra.mxu0 %v96
  %117 = vmatpush.msra.mxu0 %v95
  %118 = vmatmul.f32.gmra.mxu0 %v100
  %v119 = vpop.f32.mrf.mxu0
  %v120 = vadd.f32 0.0, %v119
  %121 = vdwg.mxu0
  %v122 = vadd.f32 %v93, %v120
  %v123 = vld [vmem:[%s5] sm:$0x1]
  %v125 = vperm.slane %v123, 0
  %v127 = vadd.f32 %v122, %v125
  %v128 = vmax.f32 %v127, 0.0
  %v129 = vld [vmem:[%s6] sm:$0x1]
  %v131 = vperm.slane %v129, 0
  %v133 = vmul.f32 %v128, %v131
  %vm134 = vcmask 523264
  %v135 = vsel %vm134, %v133, 0.0
  %136 = vadd.xlane.f32.xlu0 %v135
  %v137 = vpop.xlane.xlu0 %136
  %s138 = sld [smem:[#allocation2]]
  %v139 = vstv %s138
  %v140 = vadd.f32 %v137, %v139
  %v141 = vlaneseq
  %v142 = vand.u32 %v141, 127
  %vm143 = vcmp.eq.s32.totalorder %v142, 0
  %145 = vset.pattern.permute.xlu0 0
  %146 = vperm.xlu0 %145, %v40
  %v147 = vpop.permute.xlu0 %146
  %v149 = vsel %vm143, %v147, %v140
  %vm150 = vcmask 15360
  %151 = vst.msk [vmem:[%s8] sm:$0xff] %vm150, %v149
  // Predicated region
  $region34: #{tpu_custom_call.1} parent=0 // pred_check
    _
  $region35: #{tpu_custom_call.1} parent=0 // pred_check_branch
    %153 = sbr.rel (0) target = $region37
  $region36: #{tpu_custom_call.1} parent=0 // pred_region
    _
  $region37: #{tpu_custom_call.1} parent=0 // pred_fallthru
    _
  // Predicated region
  $region38: #{tpu_custom_call.1} parent=0 // pred_check
    _
  $region39: #{tpu_custom_call.1} parent=0 // pred_check_branch
    %155 = sbr.rel (0) target = $region41
  $region40: #{tpu_custom_call.1} parent=0 // pred_region
    _
  $region41: #{tpu_custom_call.1} parent=0 // pred_fallthru
    _

</llo_original>
